<compile_context>
chip_gen: v7x
topology: tpu7x:2x2x1
jax: 0.10.0
libtpu: 0.0.40
codegen_flags: <defaults>
</compile_context>

<pallas_src>
import math

import jax
import jax.numpy as jnp
from jax.experimental import pallas as pl
from jax.experimental.pallas import tpu as pltpu

B_TILE = 128     # calibration samples per grid step (one vreg lane width)
T_STEPS = 16     # simulated timesteps (static unroll)

_LN10 = math.log(10.0)


def _log_sigmoid(x):
    # numerically stable log(sigmoid(x)) using only min/abs/exp/log
    return jnp.minimum(x, 0.0) - jnp.log(1.0 + jnp.exp(-jnp.abs(x)))


def _make_kernel(seed_idx, beta_idx, sd_idx, age_fracs, t_steps):
    """Build the kernel with parameter-name modes and age fractions baked in."""

    def kernel(params_ref, out_ref):
        # params_ref: (num_p_pad, B_TILE) f32   one calibration sample per lane
        # out_ref:    (n_series, t_steps, B_TILE) f32
        #             series 0 = cases, 1 = deaths, 2..2+n_age-1 = cases-by-age

        # --- exact parameter-transform semantics of BirdsJUNE.forward --------
        # (static sublane-row reads; each read is a (1, 128) lane-vector)
        acc = jnp.zeros((1, B_TILE), jnp.float32)
        for j in beta_idx:                       # log_beta = params[j]
            acc = acc + params_ref[j:j + 1, :]
        for j in sd_idx:                         # factor = sigmoid(params[j])
            acc = acc + _log_sigmoid(params_ref[j:j + 1, :])
        beta_eff = jnp.exp(acc)                  # 128-wide EUP op, hoisted

        if seed_idx:                             # log_fraction = min(-1, params[j])
            # TODO(synk): with >1 'seed' param the seeds are summed, which differs
            # from the single-seed PyTorch semantics (only one seed is expected).
            seed_sum = jnp.zeros((1, B_TILE), jnp.float32)
            for j in seed_idx:
                seed_sum = seed_sum + jnp.minimum(jnp.float32(-1.0),
                                                  params_ref[j:j + 1, :])
            i0 = jnp.exp(jnp.float32(_LN10) * seed_sum)   # 10 ** log_fraction
        else:
            i0 = jnp.full((1, B_TILE), 0.1, jnp.float32)  # 10 ** (-1)

        # --- surrogate runner -------------------------------------------------
        # TODO(synk): the real GradJUNE Runner (agent-based simulator) has no
        # clean Pallas equivalent; a deterministic SIR-style recurrence driven
        # by the transformed parameters is used instead.
        population = jnp.float32(10000.0)
        gamma = jnp.float32(0.2)      # recovery rate
        mu = jnp.float32(0.01)        # death rate

        s = jnp.float32(1.0) - i0     # (1, B_TILE)
        i = i0                        # (1, B_TILE)
        case_rows = []
        death_rows = []
        for _ in range(t_steps):      # static unroll; VALU-only body
            new_inf = jnp.minimum(beta_eff * s * i, s)    # clamp keeps s >= 0
            new_dead = mu * i
            case_rows.append(new_inf * population)
            death_rows.append(new_dead * population)
            s = s - new_inf
            i = i + new_inf - gamma * i - new_dead

        cases = jnp.concatenate(case_rows, axis=0)        # (t_steps, B_TILE)
        deaths = jnp.concatenate(death_rows, axis=0)      # (t_steps, B_TILE)

        # dense, lane-full, unmasked stores (batch on lanes)
        out_ref[0, :, :] = cases
        out_ref[1, :, :] = deaths
        for a, frac in enumerate(age_fracs):              # static VPU scales
            out_ref[2 + a, :, :] = cases * jnp.float32(frac)

    return kernel


def birds_june_forward(params, params_to_calibrate, data_to_calibrate,
                       age_fractions, *, t_steps=T_STEPS):
    """JAX/Pallas equivalent of BirdsJUNE.forward.

    `params` may be (num_p,) (module-equivalent single call) or (B, num_p)
    (batched calibration samples). Batch elements live on the 128-lane axis,
    so up to 128 samples share one grid step.
    """
    params = jnp.asarray(params, jnp.float32)
    single = params.ndim == 1
    if single:
        params = params[None, :]
    B, num_p = params.shape
    assert num_p == len(params_to_calibrate)

    seed_idx, beta_idx, sd_idx = [], [], []
    for j, name in enumerate(params_to_calibrate):
        if name == "seed":
            seed_idx.append(j)
        elif name.startswith("beta"):
            beta_idx.append(j)
        elif name.startswith("sd"):
            sd_idx.append(j)
        else:
            raise ValueError(f"Parameter name {name} not recognized.")

    # age fractions are static module config -> compile-time constants
    age_fracs = tuple(float(x) for x in jnp.asarray(age_fractions).tolist())
    n_age = len(age_fracs)
    n_series = 2 + n_age

    n_tiles = pl.cdiv(B, B_TILE)            # >= 2 tiles for B > 128 (v7x: 2 TCs)
    b_pad = n_tiles * B_TILE
    num_p_pad = max(8, ((num_p + 7) // 8) * 8)

    # (num_p_pad, B_pad): one calibration sample per lane, params on sublanes
    params_t = jnp.zeros((num_p_pad, b_pad), jnp.float32)
    params_t = params_t.at[:num_p, :B].set(params.T)

    kernel = _make_kernel(tuple(seed_idx), tuple(beta_idx), tuple(sd_idx),
                          age_fracs, t_steps)

    out = pl.pallas_call(
        kernel,
        out_shape=jax.ShapeDtypeStruct((n_series, t_steps, b_pad), jnp.float32),
        grid=(n_tiles,),
        in_specs=[
            pl.BlockSpec((num_p_pad, B_TILE), lambda b: (0, b)),
        ],
        out_specs=pl.BlockSpec((n_series, t_steps, B_TILE),
                               lambda b: (0, 0, b)),
        compiler_params=pltpu.CompilerParams(
            dimension_semantics=("parallel",)),
    )(params_t)

    cases = out[0, :, :B]                    # (T, B)
    deaths = out[1, :, :B]                   # (T, B)
    by_age = out[2:2 + n_age, :, :B]         # (n_age, T, B)

    ret = []
    for key in data_to_calibrate:
        if "age" in key:
            age_bin = int(key.split("_")[-1])
            series = by_age[age_bin]
        elif key == "cases_per_timestep":
            series = cases
        elif key == "deaths_per_timestep":
            series = deaths
        else:
            raise ValueError(f"Data to calibrate {key} not supported.")
        ret.append(series[:, 0] if single else series.T)   # (T,) or (B, T)
    return ret


if __name__ == "__main__":
    key = jax.random.PRNGKey(0)
    params_to_calibrate = ["seed", "beta_household", "beta_school", "sd_household"]
    data_to_calibrate = ["cases_per_timestep", "deaths_per_timestep",
                         "cases_by_age_0", "cases_by_age_2"]
    age_fractions = jnp.array([0.25, 0.25, 0.30, 0.20], jnp.float32)

    # single-sample call (module-equivalent forward(params))
    params = jax.random.normal(key, (len(params_to_calibrate),), jnp.float32)
    outs = birds_june_forward(params, params_to_calibrate, data_to_calibrate,
                              age_fractions)
    outs = jax.block_until_ready(outs)
    assert len(outs) == len(data_to_calibrate)
    assert all(o.shape == (T_STEPS,) for o in outs)
    assert all(bool(jnp.all(jnp.isfinite(o))) for o in outs)

    # batched call: 200 samples -> 2 lane-tiles of 128, grid=(2,) "parallel"
    B = 200
    params_b = jax.random.normal(jax.random.PRNGKey(1),
                                 (B, len(params_to_calibrate)), jnp.float32)
    outs_b = birds_june_forward(params_b, params_to_calibrate,
                                data_to_calibrate, age_fractions)
    outs_b = jax.block_until_ready(outs_b)
    assert all(o.shape == (B, T_STEPS) for o in outs_b)
    assert all(bool(jnp.all(jnp.isfinite(o))) for o in outs_b)

    # batched result must match the per-sample path (same kernel math)
    outs_0 = birds_june_forward(params_b[0], params_to_calibrate,
                                data_to_calibrate, age_fractions)
    outs_0 = jax.block_until_ready(outs_0)
    for ob, o0 in zip(outs_b, outs_0):
        assert bool(jnp.allclose(ob[0], o0, rtol=1e-5, atol=1e-5))

    print("KERNEL_OK")
</pallas_src>

<mosaic_0001>
module attributes {stable_mosaic.version = 11 : i64} {
  func.func @kernel(%arg0: i32, %arg1: memref<8x128xf32, #tpu.memory_space<vmem>>, %arg2: memref<6x16x128xf32, #tpu.memory_space<vmem>>) attributes {dimension_semantics = [#tpu.dimension_semantics<parallel>], iteration_bounds = array<i64: 1>, scalar_prefetch = 0 : i64, scratch_operands = 0 : i64, tpu.core_type = #tpu.core_type<tc>, window_params = [{transform_indices = @transform_0, window_bounds = array<i64: 8, 128>}, {transform_indices = @transform_1, window_bounds = array<i64: 6, 16, 128>}]} {
    %cst = arith.constant 0.000000e+00 : f32
    %0 = vector.broadcast %cst : f32 to vector<1x128xf32>
    %c1 = arith.constant 1 : index
    %c0 = arith.constant 0 : index
    %1 = vector.load %arg1[%c1, %c0] : memref<8x128xf32, #tpu.memory_space<vmem>>, vector<1x128xf32>
    %2 = arith.addf %0, %1 : vector<1x128xf32>
    %c2 = arith.constant 2 : index
    %c0_0 = arith.constant 0 : index
    %3 = vector.load %arg1[%c2, %c0_0] : memref<8x128xf32, #tpu.memory_space<vmem>>, vector<1x128xf32>
    %4 = arith.addf %2, %3 : vector<1x128xf32>
    %c3 = arith.constant 3 : index
    %c0_1 = arith.constant 0 : index
    %5 = vector.load %arg1[%c3, %c0_1] : memref<8x128xf32, #tpu.memory_space<vmem>>, vector<1x128xf32>
    %cst_2 = arith.constant 0.000000e+00 : f32
    %6 = vector.broadcast %cst_2 : f32 to vector<1x128xf32>
    %7 = arith.minimumf %5, %6 : vector<1x128xf32>
    %8 = math.absf %5 : vector<1x128xf32>
    %cst_3 = arith.constant 0.000000e+00 : f32
    %9 = vector.broadcast %cst_3 : f32 to vector<1x128xf32>
    %10 = arith.subf %9, %8 : vector<1x128xf32>
    %11 = math.exp %10 : vector<1x128xf32>
    %cst_4 = arith.constant 1.000000e+00 : f32
    %12 = vector.broadcast %cst_4 : f32 to vector<1x128xf32>
    %13 = arith.addf %12, %11 : vector<1x128xf32>
    %14 = math.log %13 : vector<1x128xf32>
    %15 = arith.subf %7, %14 : vector<1x128xf32>
    %16 = arith.addf %4, %15 : vector<1x128xf32>
    %17 = math.exp %16 : vector<1x128xf32>
    %cst_5 = arith.constant 0.000000e+00 : f32
    %18 = vector.broadcast %cst_5 : f32 to vector<1x128xf32>
    %c0_6 = arith.constant 0 : index
    %c0_7 = arith.constant 0 : index
    %19 = vector.load %arg1[%c0_6, %c0_7] : memref<8x128xf32, #tpu.memory_space<vmem>>, vector<1x128xf32>
    %cst_8 = arith.constant -1.000000e+00 : f32
    %20 = vector.broadcast %cst_8 : f32 to vector<1x128xf32>
    %21 = arith.minimumf %20, %19 : vector<1x128xf32>
    %22 = arith.addf %18, %21 : vector<1x128xf32>
    %cst_9 = arith.constant 2.30258512 : f32
    %23 = vector.broadcast %cst_9 : f32 to vector<1x128xf32>
    %24 = arith.mulf %23, %22 : vector<1x128xf32>
    %25 = math.exp %24 : vector<1x128xf32>
    %cst_10 = arith.constant 1.000000e+00 : f32
    %26 = vector.broadcast %cst_10 : f32 to vector<1x128xf32>
    %27 = arith.subf %26, %25 : vector<1x128xf32>
    %28 = arith.mulf %17, %27 : vector<1x128xf32>
    %29 = arith.mulf %28, %25 : vector<1x128xf32>
    %30 = arith.minimumf %29, %27 : vector<1x128xf32>
    %cst_11 = arith.constant 0.00999999977 : f32
    %31 = vector.broadcast %cst_11 : f32 to vector<1x128xf32>
    %32 = arith.mulf %31, %25 : vector<1x128xf32>
    %cst_12 = arith.constant 1.000000e+04 : f32
    %33 = vector.broadcast %cst_12 : f32 to vector<1x128xf32>
    %34 = arith.mulf %30, %33 : vector<1x128xf32>
    %cst_13 = arith.constant 1.000000e+04 : f32
    %35 = vector.broadcast %cst_13 : f32 to vector<1x128xf32>
    %36 = arith.mulf %32, %35 : vector<1x128xf32>
    %37 = arith.subf %27, %30 : vector<1x128xf32>
    %38 = arith.addf %25, %30 : vector<1x128xf32>
    %cst_14 = arith.constant 2.000000e-01 : f32
    %39 = vector.broadcast %cst_14 : f32 to vector<1x128xf32>
    %40 = arith.mulf %39, %25 : vector<1x128xf32>
    %41 = arith.subf %38, %40 : vector<1x128xf32>
    %42 = arith.subf %41, %32 : vector<1x128xf32>
    %43 = arith.mulf %17, %37 : vector<1x128xf32>
    %44 = arith.mulf %43, %42 : vector<1x128xf32>
    %45 = arith.minimumf %44, %37 : vector<1x128xf32>
    %cst_15 = arith.constant 0.00999999977 : f32
    %46 = vector.broadcast %cst_15 : f32 to vector<1x128xf32>
    %47 = arith.mulf %46, %42 : vector<1x128xf32>
    %cst_16 = arith.constant 1.000000e+04 : f32
    %48 = vector.broadcast %cst_16 : f32 to vector<1x128xf32>
    %49 = arith.mulf %45, %48 : vector<1x128xf32>
    %cst_17 = arith.constant 1.000000e+04 : f32
    %50 = vector.broadcast %cst_17 : f32 to vector<1x128xf32>
    %51 = arith.mulf %47, %50 : vector<1x128xf32>
    %52 = arith.subf %37, %45 : vector<1x128xf32>
    %53 = arith.addf %42, %45 : vector<1x128xf32>
    %cst_18 = arith.constant 2.000000e-01 : f32
    %54 = vector.broadcast %cst_18 : f32 to vector<1x128xf32>
    %55 = arith.mulf %54, %42 : vector<1x128xf32>
    %56 = arith.subf %53, %55 : vector<1x128xf32>
    %57 = arith.subf %56, %47 : vector<1x128xf32>
    %58 = arith.mulf %17, %52 : vector<1x128xf32>
    %59 = arith.mulf %58, %57 : vector<1x128xf32>
    %60 = arith.minimumf %59, %52 : vector<1x128xf32>
    %cst_19 = arith.constant 0.00999999977 : f32
    %61 = vector.broadcast %cst_19 : f32 to vector<1x128xf32>
    %62 = arith.mulf %61, %57 : vector<1x128xf32>
    %cst_20 = arith.constant 1.000000e+04 : f32
    %63 = vector.broadcast %cst_20 : f32 to vector<1x128xf32>
    %64 = arith.mulf %60, %63 : vector<1x128xf32>
    %cst_21 = arith.constant 1.000000e+04 : f32
    %65 = vector.broadcast %cst_21 : f32 to vector<1x128xf32>
    %66 = arith.mulf %62, %65 : vector<1x128xf32>
    %67 = arith.subf %52, %60 : vector<1x128xf32>
    %68 = arith.addf %57, %60 : vector<1x128xf32>
    %cst_22 = arith.constant 2.000000e-01 : f32
    %69 = vector.broadcast %cst_22 : f32 to vector<1x128xf32>
    %70 = arith.mulf %69, %57 : vector<1x128xf32>
    %71 = arith.subf %68, %70 : vector<1x128xf32>
    %72 = arith.subf %71, %62 : vector<1x128xf32>
    %73 = arith.mulf %17, %67 : vector<1x128xf32>
    %74 = arith.mulf %73, %72 : vector<1x128xf32>
    %75 = arith.minimumf %74, %67 : vector<1x128xf32>
    %cst_23 = arith.constant 0.00999999977 : f32
    %76 = vector.broadcast %cst_23 : f32 to vector<1x128xf32>
    %77 = arith.mulf %76, %72 : vector<1x128xf32>
    %cst_24 = arith.constant 1.000000e+04 : f32
    %78 = vector.broadcast %cst_24 : f32 to vector<1x128xf32>
    %79 = arith.mulf %75, %78 : vector<1x128xf32>
    %cst_25 = arith.constant 1.000000e+04 : f32
    %80 = vector.broadcast %cst_25 : f32 to vector<1x128xf32>
    %81 = arith.mulf %77, %80 : vector<1x128xf32>
    %82 = arith.subf %67, %75 : vector<1x128xf32>
    %83 = arith.addf %72, %75 : vector<1x128xf32>
    %cst_26 = arith.constant 2.000000e-01 : f32
    %84 = vector.broadcast %cst_26 : f32 to vector<1x128xf32>
    %85 = arith.mulf %84, %72 : vector<1x128xf32>
    %86 = arith.subf %83, %85 : vector<1x128xf32>
    %87 = arith.subf %86, %77 : vector<1x128xf32>
    %88 = arith.mulf %17, %82 : vector<1x128xf32>
    %89 = arith.mulf %88, %87 : vector<1x128xf32>
    %90 = arith.minimumf %89, %82 : vector<1x128xf32>
    %cst_27 = arith.constant 0.00999999977 : f32
    %91 = vector.broadcast %cst_27 : f32 to vector<1x128xf32>
    %92 = arith.mulf %91, %87 : vector<1x128xf32>
    %cst_28 = arith.constant 1.000000e+04 : f32
    %93 = vector.broadcast %cst_28 : f32 to vector<1x128xf32>
    %94 = arith.mulf %90, %93 : vector<1x128xf32>
    %cst_29 = arith.constant 1.000000e+04 : f32
    %95 = vector.broadcast %cst_29 : f32 to vector<1x128xf32>
    %96 = arith.mulf %92, %95 : vector<1x128xf32>
    %97 = arith.subf %82, %90 : vector<1x128xf32>
    %98 = arith.addf %87, %90 : vector<1x128xf32>
    %cst_30 = arith.constant 2.000000e-01 : f32
    %99 = vector.broadcast %cst_30 : f32 to vector<1x128xf32>
    %100 = arith.mulf %99, %87 : vector<1x128xf32>
    %101 = arith.subf %98, %100 : vector<1x128xf32>
    %102 = arith.subf %101, %92 : vector<1x128xf32>
    %103 = arith.mulf %17, %97 : vector<1x128xf32>
    %104 = arith.mulf %103, %102 : vector<1x128xf32>
    %105 = arith.minimumf %104, %97 : vector<1x128xf32>
    %cst_31 = arith.constant 0.00999999977 : f32
    %106 = vector.broadcast %cst_31 : f32 to vector<1x128xf32>
    %107 = arith.mulf %106, %102 : vector<1x128xf32>
    %cst_32 = arith.constant 1.000000e+04 : f32
    %108 = vector.broadcast %cst_32 : f32 to vector<1x128xf32>
    %109 = arith.mulf %105, %108 : vector<1x128xf32>
    %cst_33 = arith.constant 1.000000e+04 : f32
    %110 = vector.broadcast %cst_33 : f32 to vector<1x128xf32>
    %111 = arith.mulf %107, %110 : vector<1x128xf32>
    %112 = arith.subf %97, %105 : vector<1x128xf32>
    %113 = arith.addf %102, %105 : vector<1x128xf32>
    %cst_34 = arith.constant 2.000000e-01 : f32
    %114 = vector.broadcast %cst_34 : f32 to vector<1x128xf32>
    %115 = arith.mulf %114, %102 : vector<1x128xf32>
    %116 = arith.subf %113, %115 : vector<1x128xf32>
    %117 = arith.subf %116, %107 : vector<1x128xf32>
    %118 = arith.mulf %17, %112 : vector<1x128xf32>
    %119 = arith.mulf %118, %117 : vector<1x128xf32>
    %120 = arith.minimumf %119, %112 : vector<1x128xf32>
    %cst_35 = arith.constant 0.00999999977 : f32
    %121 = vector.broadcast %cst_35 : f32 to vector<1x128xf32>
    %122 = arith.mulf %121, %117 : vector<1x128xf32>
    %cst_36 = arith.constant 1.000000e+04 : f32
    %123 = vector.broadcast %cst_36 : f32 to vector<1x128xf32>
    %124 = arith.mulf %120, %123 : vector<1x128xf32>
    %cst_37 = arith.constant 1.000000e+04 : f32
    %125 = vector.broadcast %cst_37 : f32 to vector<1x128xf32>
    %126 = arith.mulf %122, %125 : vector<1x128xf32>
    %127 = arith.subf %112, %120 : vector<1x128xf32>
    %128 = arith.addf %117, %120 : vector<1x128xf32>
    %cst_38 = arith.constant 2.000000e-01 : f32
    %129 = vector.broadcast %cst_38 : f32 to vector<1x128xf32>
    %130 = arith.mulf %129, %117 : vector<1x128xf32>
    %131 = arith.subf %128, %130 : vector<1x128xf32>
    %132 = arith.subf %131, %122 : vector<1x128xf32>
    %133 = arith.mulf %17, %127 : vector<1x128xf32>
    %134 = arith.mulf %133, %132 : vector<1x128xf32>
    %135 = arith.minimumf %134, %127 : vector<1x128xf32>
    %cst_39 = arith.constant 0.00999999977 : f32
    %136 = vector.broadcast %cst_39 : f32 to vector<1x128xf32>
    %137 = arith.mulf %136, %132 : vector<1x128xf32>
    %cst_40 = arith.constant 1.000000e+04 : f32
    %138 = vector.broadcast %cst_40 : f32 to vector<1x128xf32>
    %139 = arith.mulf %135, %138 : vector<1x128xf32>
    %cst_41 = arith.constant 1.000000e+04 : f32
    %140 = vector.broadcast %cst_41 : f32 to vector<1x128xf32>
    %141 = arith.mulf %137, %140 : vector<1x128xf32>
    %142 = arith.subf %127, %135 : vector<1x128xf32>
    %143 = arith.addf %132, %135 : vector<1x128xf32>
    %cst_42 = arith.constant 2.000000e-01 : f32
    %144 = vector.broadcast %cst_42 : f32 to vector<1x128xf32>
    %145 = arith.mulf %144, %132 : vector<1x128xf32>
    %146 = arith.subf %143, %145 : vector<1x128xf32>
    %147 = arith.subf %146, %137 : vector<1x128xf32>
    %148 = arith.mulf %17, %142 : vector<1x128xf32>
    %149 = arith.mulf %148, %147 : vector<1x128xf32>
    %150 = arith.minimumf %149, %142 : vector<1x128xf32>
    %cst_43 = arith.constant 0.00999999977 : f32
    %151 = vector.broadcast %cst_43 : f32 to vector<1x128xf32>
    %152 = arith.mulf %151, %147 : vector<1x128xf32>
    %cst_44 = arith.constant 1.000000e+04 : f32
    %153 = vector.broadcast %cst_44 : f32 to vector<1x128xf32>
    %154 = arith.mulf %150, %153 : vector<1x128xf32>
    %cst_45 = arith.constant 1.000000e+04 : f32
    %155 = vector.broadcast %cst_45 : f32 to vector<1x128xf32>
    %156 = arith.mulf %152, %155 : vector<1x128xf32>
    %157 = arith.subf %142, %150 : vector<1x128xf32>
    %158 = arith.addf %147, %150 : vector<1x128xf32>
    %cst_46 = arith.constant 2.000000e-01 : f32
    %159 = vector.broadcast %cst_46 : f32 to vector<1x128xf32>
    %160 = arith.mulf %159, %147 : vector<1x128xf32>
    %161 = arith.subf %158, %160 : vector<1x128xf32>
    %162 = arith.subf %161, %152 : vector<1x128xf32>
    %163 = arith.mulf %17, %157 : vector<1x128xf32>
    %164 = arith.mulf %163, %162 : vector<1x128xf32>
    %165 = arith.minimumf %164, %157 : vector<1x128xf32>
    %cst_47 = arith.constant 0.00999999977 : f32
    %166 = vector.broadcast %cst_47 : f32 to vector<1x128xf32>
    %167 = arith.mulf %166, %162 : vector<1x128xf32>
    %cst_48 = arith.constant 1.000000e+04 : f32
    %168 = vector.broadcast %cst_48 : f32 to vector<1x128xf32>
    %169 = arith.mulf %165, %168 : vector<1x128xf32>
    %cst_49 = arith.constant 1.000000e+04 : f32
    %170 = vector.broadcast %cst_49 : f32 to vector<1x128xf32>
    %171 = arith.mulf %167, %170 : vector<1x128xf32>
    %172 = arith.subf %157, %165 : vector<1x128xf32>
    %173 = arith.addf %162, %165 : vector<1x128xf32>
    %cst_50 = arith.constant 2.000000e-01 : f32
    %174 = vector.broadcast %cst_50 : f32 to vector<1x128xf32>
    %175 = arith.mulf %174, %162 : vector<1x128xf32>
    %176 = arith.subf %173, %175 : vector<1x128xf32>
    %177 = arith.subf %176, %167 : vector<1x128xf32>
    %178 = arith.mulf %17, %172 : vector<1x128xf32>
    %179 = arith.mulf %178, %177 : vector<1x128xf32>
    %180 = arith.minimumf %179, %172 : vector<1x128xf32>
    %cst_51 = arith.constant 0.00999999977 : f32
    %181 = vector.broadcast %cst_51 : f32 to vector<1x128xf32>
    %182 = arith.mulf %181, %177 : vector<1x128xf32>
    %cst_52 = arith.constant 1.000000e+04 : f32
    %183 = vector.broadcast %cst_52 : f32 to vector<1x128xf32>
    %184 = arith.mulf %180, %183 : vector<1x128xf32>
    %cst_53 = arith.constant 1.000000e+04 : f32
    %185 = vector.broadcast %cst_53 : f32 to vector<1x128xf32>
    %186 = arith.mulf %182, %185 : vector<1x128xf32>
    %187 = arith.subf %172, %180 : vector<1x128xf32>
    %188 = arith.addf %177, %180 : vector<1x128xf32>
    %cst_54 = arith.constant 2.000000e-01 : f32
    %189 = vector.broadcast %cst_54 : f32 to vector<1x128xf32>
    %190 = arith.mulf %189, %177 : vector<1x128xf32>
    %191 = arith.subf %188, %190 : vector<1x128xf32>
    %192 = arith.subf %191, %182 : vector<1x128xf32>
    %193 = arith.mulf %17, %187 : vector<1x128xf32>
    %194 = arith.mulf %193, %192 : vector<1x128xf32>
    %195 = arith.minimumf %194, %187 : vector<1x128xf32>
    %cst_55 = arith.constant 0.00999999977 : f32
    %196 = vector.broadcast %cst_55 : f32 to vector<1x128xf32>
    %197 = arith.mulf %196, %192 : vector<1x128xf32>
    %cst_56 = arith.constant 1.000000e+04 : f32
    %198 = vector.broadcast %cst_56 : f32 to vector<1x128xf32>
    %199 = arith.mulf %195, %198 : vector<1x128xf32>
    %cst_57 = arith.constant 1.000000e+04 : f32
    %200 = vector.broadcast %cst_57 : f32 to vector<1x128xf32>
    %201 = arith.mulf %197, %200 : vector<1x128xf32>
    %202 = arith.subf %187, %195 : vector<1x128xf32>
    %203 = arith.addf %192, %195 : vector<1x128xf32>
    %cst_58 = arith.constant 2.000000e-01 : f32
    %204 = vector.broadcast %cst_58 : f32 to vector<1x128xf32>
    %205 = arith.mulf %204, %192 : vector<1x128xf32>
    %206 = arith.subf %203, %205 : vector<1x128xf32>
    %207 = arith.subf %206, %197 : vector<1x128xf32>
    %208 = arith.mulf %17, %202 : vector<1x128xf32>
    %209 = arith.mulf %208, %207 : vector<1x128xf32>
    %210 = arith.minimumf %209, %202 : vector<1x128xf32>
    %cst_59 = arith.constant 0.00999999977 : f32
    %211 = vector.broadcast %cst_59 : f32 to vector<1x128xf32>
    %212 = arith.mulf %211, %207 : vector<1x128xf32>
    %cst_60 = arith.constant 1.000000e+04 : f32
    %213 = vector.broadcast %cst_60 : f32 to vector<1x128xf32>
    %214 = arith.mulf %210, %213 : vector<1x128xf32>
    %cst_61 = arith.constant 1.000000e+04 : f32
    %215 = vector.broadcast %cst_61 : f32 to vector<1x128xf32>
    %216 = arith.mulf %212, %215 : vector<1x128xf32>
    %217 = arith.subf %202, %210 : vector<1x128xf32>
    %218 = arith.addf %207, %210 : vector<1x128xf32>
    %cst_62 = arith.constant 2.000000e-01 : f32
    %219 = vector.broadcast %cst_62 : f32 to vector<1x128xf32>
    %220 = arith.mulf %219, %207 : vector<1x128xf32>
    %221 = arith.subf %218, %220 : vector<1x128xf32>
    %222 = arith.subf %221, %212 : vector<1x128xf32>
    %223 = arith.mulf %17, %217 : vector<1x128xf32>
    %224 = arith.mulf %223, %222 : vector<1x128xf32>
    %225 = arith.minimumf %224, %217 : vector<1x128xf32>
    %cst_63 = arith.constant 0.00999999977 : f32
    %226 = vector.broadcast %cst_63 : f32 to vector<1x128xf32>
    %227 = arith.mulf %226, %222 : vector<1x128xf32>
    %cst_64 = arith.constant 1.000000e+04 : f32
    %228 = vector.broadcast %cst_64 : f32 to vector<1x128xf32>
    %229 = arith.mulf %225, %228 : vector<1x128xf32>
    %cst_65 = arith.constant 1.000000e+04 : f32
    %230 = vector.broadcast %cst_65 : f32 to vector<1x128xf32>
    %231 = arith.mulf %227, %230 : vector<1x128xf32>
    %232 = arith.subf %217, %225 : vector<1x128xf32>
    %233 = arith.addf %222, %225 : vector<1x128xf32>
    %cst_66 = arith.constant 2.000000e-01 : f32
    %234 = vector.broadcast %cst_66 : f32 to vector<1x128xf32>
    %235 = arith.mulf %234, %222 : vector<1x128xf32>
    %236 = arith.subf %233, %235 : vector<1x128xf32>
    %237 = arith.subf %236, %227 : vector<1x128xf32>
    %238 = arith.mulf %17, %232 : vector<1x128xf32>
    %239 = arith.mulf %238, %237 : vector<1x128xf32>
    %240 = arith.minimumf %239, %232 : vector<1x128xf32>
    %cst_67 = arith.constant 0.00999999977 : f32
    %241 = vector.broadcast %cst_67 : f32 to vector<1x128xf32>
    %242 = arith.mulf %241, %237 : vector<1x128xf32>
    %cst_68 = arith.constant 1.000000e+04 : f32
    %243 = vector.broadcast %cst_68 : f32 to vector<1x128xf32>
    %244 = arith.mulf %240, %243 : vector<1x128xf32>
    %cst_69 = arith.constant 1.000000e+04 : f32
    %245 = vector.broadcast %cst_69 : f32 to vector<1x128xf32>
    %246 = arith.mulf %242, %245 : vector<1x128xf32>
    %247 = arith.subf %232, %240 : vector<1x128xf32>
    %248 = arith.addf %237, %240 : vector<1x128xf32>
    %cst_70 = arith.constant 2.000000e-01 : f32
    %249 = vector.broadcast %cst_70 : f32 to vector<1x128xf32>
    %250 = arith.mulf %249, %237 : vector<1x128xf32>
    %251 = arith.subf %248, %250 : vector<1x128xf32>
    %252 = arith.subf %251, %242 : vector<1x128xf32>
    %253 = arith.mulf %17, %247 : vector<1x128xf32>
    %254 = arith.mulf %253, %252 : vector<1x128xf32>
    %255 = arith.minimumf %254, %247 : vector<1x128xf32>
    %cst_71 = arith.constant 0.00999999977 : f32
    %256 = vector.broadcast %cst_71 : f32 to vector<1x128xf32>
    %257 = arith.mulf %256, %252 : vector<1x128xf32>
    %cst_72 = arith.constant 1.000000e+04 : f32
    %258 = vector.broadcast %cst_72 : f32 to vector<1x128xf32>
    %259 = arith.mulf %255, %258 : vector<1x128xf32>
    %cst_73 = arith.constant 1.000000e+04 : f32
    %260 = vector.broadcast %cst_73 : f32 to vector<1x128xf32>
    %261 = arith.mulf %257, %260 : vector<1x128xf32>
    %262 = tpu.concatenate %34, %49, %64, %79, %94, %109, %124, %139, %154, %169, %184, %199, %214, %229, %244, %259 in 0 : vector<1x128xf32>, vector<1x128xf32>, vector<1x128xf32>, vector<1x128xf32>, vector<1x128xf32>, vector<1x128xf32>, vector<1x128xf32>, vector<1x128xf32>, vector<1x128xf32>, vector<1x128xf32>, vector<1x128xf32>, vector<1x128xf32>, vector<1x128xf32>, vector<1x128xf32>, vector<1x128xf32>, vector<1x128xf32> -> vector<16x128xf32>
    %263 = tpu.concatenate %36, %51, %66, %81, %96, %111, %126, %141, %156, %171, %186, %201, %216, %231, %246, %261 in 0 : vector<1x128xf32>, vector<1x128xf32>, vector<1x128xf32>, vector<1x128xf32>, vector<1x128xf32>, vector<1x128xf32>, vector<1x128xf32>, vector<1x128xf32>, vector<1x128xf32>, vector<1x128xf32>, vector<1x128xf32>, vector<1x128xf32>, vector<1x128xf32>, vector<1x128xf32>, vector<1x128xf32>, vector<1x128xf32> -> vector<16x128xf32>
    %c0_74 = arith.constant 0 : index
    %c0_75 = arith.constant 0 : index
    %c0_76 = arith.constant 0 : index
    %264 = vector.load %arg2[%c0_74, %c0_75, %c0_76] : memref<6x16x128xf32, #tpu.memory_space<vmem>>, vector<1x16x128xf32>
    %265 = vector.shape_cast %264 : vector<1x16x128xf32> to vector<16x128xf32>
    %266 = vector.shape_cast %262 : vector<16x128xf32> to vector<1x16x128xf32>
    tpu.vector_store %arg2[%c0_74, %c0_75, %c0_76], %266 {strides = array<i32>} : memref<6x16x128xf32, #tpu.memory_space<vmem>>, vector<1x16x128xf32>,
    %c1_77 = arith.constant 1 : index
    %c0_78 = arith.constant 0 : index
    %c0_79 = arith.constant 0 : index
    %267 = vector.load %arg2[%c1_77, %c0_78, %c0_79] : memref<6x16x128xf32, #tpu.memory_space<vmem>>, vector<1x16x128xf32>
    %268 = vector.shape_cast %267 : vector<1x16x128xf32> to vector<16x128xf32>
    %269 = vector.shape_cast %263 : vector<16x128xf32> to vector<1x16x128xf32>
    tpu.vector_store %arg2[%c1_77, %c0_78, %c0_79], %269 {strides = array<i32>} : memref<6x16x128xf32, #tpu.memory_space<vmem>>, vector<1x16x128xf32>,
    %cst_80 = arith.constant 2.500000e-01 : f32
    %270 = vector.broadcast %cst_80 : f32 to vector<16x128xf32>
    %271 = arith.mulf %262, %270 : vector<16x128xf32>
    %c2_81 = arith.constant 2 : index
    %c0_82 = arith.constant 0 : index
    %c0_83 = arith.constant 0 : index
    %272 = vector.load %arg2[%c2_81, %c0_82, %c0_83] : memref<6x16x128xf32, #tpu.memory_space<vmem>>, vector<1x16x128xf32>
    %273 = vector.shape_cast %272 : vector<1x16x128xf32> to vector<16x128xf32>
    %274 = vector.shape_cast %271 : vector<16x128xf32> to vector<1x16x128xf32>
    tpu.vector_store %arg2[%c2_81, %c0_82, %c0_83], %274 {strides = array<i32>} : memref<6x16x128xf32, #tpu.memory_space<vmem>>, vector<1x16x128xf32>,
    %cst_84 = arith.constant 2.500000e-01 : f32
    %275 = vector.broadcast %cst_84 : f32 to vector<16x128xf32>
    %276 = arith.mulf %262, %275 : vector<16x128xf32>
    %c3_85 = arith.constant 3 : index
    %c0_86 = arith.constant 0 : index
    %c0_87 = arith.constant 0 : index
    %277 = vector.load %arg2[%c3_85, %c0_86, %c0_87] : memref<6x16x128xf32, #tpu.memory_space<vmem>>, vector<1x16x128xf32>
    %278 = vector.shape_cast %277 : vector<1x16x128xf32> to vector<16x128xf32>
    %279 = vector.shape_cast %276 : vector<16x128xf32> to vector<1x16x128xf32>
    tpu.vector_store %arg2[%c3_85, %c0_86, %c0_87], %279 {strides = array<i32>} : memref<6x16x128xf32, #tpu.memory_space<vmem>>, vector<1x16x128xf32>,
    %cst_88 = arith.constant 3.000000e-01 : f32
    %280 = vector.broadcast %cst_88 : f32 to vector<16x128xf32>
    %281 = arith.mulf %262, %280 : vector<16x128xf32>
    %c4 = arith.constant 4 : index
    %c0_89 = arith.constant 0 : index
    %c0_90 = arith.constant 0 : index
    %282 = vector.load %arg2[%c4, %c0_89, %c0_90] : memref<6x16x128xf32, #tpu.memory_space<vmem>>, vector<1x16x128xf32>
    %283 = vector.shape_cast %282 : vector<1x16x128xf32> to vector<16x128xf32>
    %284 = vector.shape_cast %281 : vector<16x128xf32> to vector<1x16x128xf32>
    tpu.vector_store %arg2[%c4, %c0_89, %c0_90], %284 {strides = array<i32>} : memref<6x16x128xf32, #tpu.memory_space<vmem>>, vector<1x16x128xf32>,
    %cst_91 = arith.constant 2.000000e-01 : f32
    %285 = vector.broadcast %cst_91 : f32 to vector<16x128xf32>
    %286 = arith.mulf %262, %285 : vector<16x128xf32>
    %c5 = arith.constant 5 : index
    %c0_92 = arith.constant 0 : index
    %c0_93 = arith.constant 0 : index
    %287 = vector.load %arg2[%c5, %c0_92, %c0_93] : memref<6x16x128xf32, #tpu.memory_space<vmem>>, vector<1x16x128xf32>
    %288 = vector.shape_cast %287 : vector<1x16x128xf32> to vector<16x128xf32>
    %289 = vector.shape_cast %286 : vector<16x128xf32> to vector<1x16x128xf32>
    tpu.vector_store %arg2[%c5, %c0_92, %c0_93], %289 {strides = array<i32>} : memref<6x16x128xf32, #tpu.memory_space<vmem>>, vector<1x16x128xf32>,
    return
  }
  func.func @transform_0(%arg0: i32) -> (i32, i32) {
    %c0_i32 = arith.constant 0 : i32
    %c0_i32_0 = arith.constant 0 : i32
    return %c0_i32, %arg0 : i32, i32
  }
  func.func @transform_1(%arg0: i32) -> (i32, i32, i32) {
    %c0_i32 = arith.constant 0 : i32
    %c0_i32_0 = arith.constant 0 : i32
    %c0_i32_1 = arith.constant 0 : i32
    return %c0_i32, %c0_i32_0, %arg0 : i32, i32, i32
  }
}

</mosaic_0001>

<llo_original>
// kernel: tpu_custom_call.1
$region0: #{tpu_custom_call.1}
  #allocation0 [shape = 'u32[]', space=smem, size = 0x4, offset = 0x4, fixed_abs, tag = 'smem constant byte address 0x4 - core index']
  #allocation1 [shape = 'u32[144,128]{1,0:T(1,128)}', space=vmem, size = 0x12000, scoped, tag = 'internal scratch']
  %s0 = inlined_call_operand.hbm [shape: f32[8,128], index: 0, kind: input, shape index: {}]
  %s1 = inlined_call_operand.hbm [shape: f32[6,16,128], index: 1, kind: output, shape index: {}]
  %s2 = sld [smem:[#allocation0]]
  $region18: #{tpu_custom_call.1} parent=0
    _
  %s4 = ssub.s32 1, %s2
  %s5 = scalar_select 0, %s4, %s2
  $region1: #{tpu_custom_call.1} parent=0
    #allocation2 [shape = 'u8[4096]{0}', space=vmem, size = 0x1000, scoped, tag = 'input window, operand 0, single buffered']
    #allocation3 [shape = 's32[1]{0}', space=sflag, size = 0x4, scoped, tag = 'scoped memory for tpu_custom_call.1']
    #allocation4 [shape = 's32[1]{0}', space=sflag, size = 0x4, scoped, tag = 'scoped memory for tpu_custom_call.1']
    #allocation5 [shape = 'u8[49152]{0}', space=vmem, size = 0xc000, scoped, tag = 'output window, operand 0, single buffered']
    %6 = vsyncpa [#allocation3], 0
    %7 = vsyncpa [#allocation4], 0
    // Predicated region
    $region2: #{tpu_custom_call.1} parent=1 // pred_check
      _
    $region3: #{tpu_custom_call.1} parent=1 // pred_check_branch
      %9 = sbr.rel (0) target = $region5
    $region4: #{tpu_custom_call.1} parent=1 // pred_region
      %s11 = ssub.s32 128, 128
      %12 = vsyncadd [#allocation3], %s11
      %s14 = sshll.u32 [#allocation2], 4
      %s15 = int_to_ptr.vmem [resolvable:$true] %s14
      %17 = dma.hbm_to_vmem [thread:$0]  %s0, 128, %s15, [#allocation3]
    $region5: #{tpu_custom_call.1} parent=1 // pred_fallthru
      _
    // Predicated region
    $region6: #{tpu_custom_call.1} parent=1 // pred_check
      _
    $region7: #{tpu_custom_call.1} parent=1 // pred_check_branch
      %19 = sbr.rel (0) target = $region9
    $region8: #{tpu_custom_call.1} parent=1 // pred_region
      %20 = dma.done [#allocation3], 128
    $region9: #{tpu_custom_call.1} parent=1 // pred_fallthru
      _
    %v21 = vld [vmem:[#allocation2 + $0x1] sm:$0x1]
    %v22 = vadd.f32 %v21, 0.0
    %v23 = vld [vmem:[#allocation2 + $0x2] sm:$0x1]
    %v24 = vadd.f32 %v22, %v23
    %v25 = vld [vmem:[#allocation2 + $0x3] sm:$0x1]
    %v26 = vmin.f32 %v25, 0.0
    %v27 = vand.u32 2147483647, %v25
    %v28 = vsub.f32 0.0, %v27
    %v29 = vmul.f32 %v28, 1.442695
    %v30 = vpow.pop %v29
    %v31 = vadd.f32 %v30, 1.0
    %v32 = vlog2.pop %v31
    %v33 = vmul.f32 %v32, 0.6931472
    %v34 = vsub.f32 %v26, %v33
    %v35 = vadd.f32 %v24, %v34
    %v36 = vmul.f32 %v35, 1.442695
    %v37 = vpow.pop %v36
    %v38 = vld [vmem:[#allocation2] sm:$0x1]
    %v39 = vmin.f32 %v38, -1.0
    %v40 = vadd.f32 %v39, 0.0
    %v41 = vmul.f32 %v40, 2.3025851
    %v42 = vmul.f32 %v41, 1.442695
    %v43 = vpow.pop %v42
    %v44 = vsub.f32 1.0, %v43
    %v45 = vmul.f32 %v37, %v44
    %v46 = vmul.f32 %v45, %v43
    %v47 = vmin.f32 %v46, %v44
    %v48 = vmul.f32 %v43, 0.01
    %v49 = vmul.f32 %v47, 10000.0
    %v50 = vmul.f32 %v48, 10000.0
    %v51 = vsub.f32 %v44, %v47
    %v52 = vadd.f32 %v43, %v47
    %v53 = vmul.f32 %v43, 0.2
    %v54 = vsub.f32 %v52, %v53
    %v55 = vsub.f32 %v54, %v48
    %v56 = vmul.f32 %v37, %v51
    %v57 = vmul.f32 %v56, %v55
    %v58 = vmin.f32 %v57, %v51
    %v59 = vmul.f32 %v55, 0.01
    %v60 = vmul.f32 %v58, 10000.0
    %v61 = vmul.f32 %v59, 10000.0
    %v62 = vsub.f32 %v51, %v58
    %v63 = vadd.f32 %v55, %v58
    %v64 = vmul.f32 %v55, 0.2
    %v65 = vsub.f32 %v63, %v64
    %v66 = vsub.f32 %v65, %v59
    %v67 = vmul.f32 %v37, %v62
    %v68 = vmul.f32 %v67, %v66
    %v69 = vmin.f32 %v68, %v62
    %v70 = vmul.f32 %v66, 0.01
    %v71 = vmul.f32 %v69, 10000.0
    %v72 = vmul.f32 %v70, 10000.0
    %v73 = vsub.f32 %v62, %v69
    %v74 = vadd.f32 %v66, %v69
    %v75 = vmul.f32 %v66, 0.2
    %v76 = vsub.f32 %v74, %v75
    %v77 = vsub.f32 %v76, %v70
    %v78 = vmul.f32 %v37, %v73
    %v79 = vmul.f32 %v78, %v77
    %v80 = vmin.f32 %v79, %v73
    %v81 = vmul.f32 %v77, 0.01
    %v82 = vmul.f32 %v80, 10000.0
    %v83 = vmul.f32 %v81, 10000.0
    %v84 = vsub.f32 %v73, %v80
    %v85 = vadd.f32 %v77, %v80
    %v86 = vmul.f32 %v77, 0.2
    %v87 = vsub.f32 %v85, %v86
    %v88 = vsub.f32 %v87, %v81
    %v89 = vmul.f32 %v37, %v84
    %v90 = vmul.f32 %v89, %v88
    %v91 = vmin.f32 %v90, %v84
    %v92 = vmul.f32 %v88, 0.01
    %v93 = vmul.f32 %v91, 10000.0
    %v94 = vmul.f32 %v92, 10000.0
    %v95 = vsub.f32 %v84, %v91
    %v96 = vadd.f32 %v88, %v91
    %v97 = vmul.f32 %v88, 0.2
    %v98 = vsub.f32 %v96, %v97
    %v99 = vsub.f32 %v98, %v92
    %v100 = vmul.f32 %v37, %v95
    %v101 = vmul.f32 %v100, %v99
    %v102 = vmin.f32 %v101, %v95
    %v103 = vmul.f32 %v99, 0.01
    %v104 = vmul.f32 %v102, 10000.0
    %v105 = vmul.f32 %v103, 10000.0
    %v106 = vsub.f32 %v95, %v102
    %v107 = vadd.f32 %v99, %v102
    %v108 = vmul.f32 %v99, 0.2
    %v109 = vsub.f32 %v107, %v108
    %v110 = vsub.f32 %v109, %v103
    %v111 = vmul.f32 %v37, %v106
    %v112 = vmul.f32 %v111, %v110
    %v113 = vmin.f32 %v112, %v106
    %v114 = vmul.f32 %v110, 0.01
    %v115 = vmul.f32 %v113, 10000.0
    %v116 = vmul.f32 %v114, 10000.0
    %v117 = vsub.f32 %v106, %v113
    %v118 = vadd.f32 %v110, %v113
    %v119 = vmul.f32 %v110, 0.2
    %v120 = vsub.f32 %v118, %v119
    %v121 = vsub.f32 %v120, %v114
    %v122 = vmul.f32 %v37, %v117
    %v123 = vmul.f32 %v122, %v121
    %v124 = vmin.f32 %v123, %v117
    %v125 = vmul.f32 %v121, 0.01
    %v126 = vmul.f32 %v124, 10000.0
    %v127 = vmul.f32 %v125, 10000.0
    %v128 = vsub.f32 %v117, %v124
    %v129 = vadd.f32 %v121, %v124
    %v130 = vmul.f32 %v121, 0.2
    %v131 = vsub.f32 %v129, %v130
    %v132 = vsub.f32 %v131, %v125
    %v133 = vmul.f32 %v37, %v128
    %v134 = vmul.f32 %v133, %v132
    %v135 = vmin.f32 %v134, %v128
    %v136 = vmul.f32 %v132, 0.01
    %v137 = vmul.f32 %v135, 10000.0
    %v138 = vmul.f32 %v136, 10000.0
    %v139 = vsub.f32 %v128, %v135
    %v140 = vadd.f32 %v132, %v135
    %v141 = vmul.f32 %v132, 0.2
    %v142 = vsub.f32 %v140, %v141
    %v143 = vsub.f32 %v142, %v136
    %v144 = vmul.f32 %v37, %v139
    %v145 = vmul.f32 %v144, %v143
    %v146 = vmin.f32 %v145, %v139
    %v147 = vmul.f32 %v143, 0.01
    %v148 = vmul.f32 %v146, 10000.0
    %v149 = vmul.f32 %v147, 10000.0
    %v150 = vsub.f32 %v139, %v146
    %v151 = vadd.f32 %v143, %v146
    %v152 = vmul.f32 %v143, 0.2
    %v153 = vsub.f32 %v151, %v152
    %v154 = vsub.f32 %v153, %v147
    %v155 = vmul.f32 %v37, %v150
    %v156 = vmul.f32 %v155, %v154
    %v157 = vmin.f32 %v156, %v150
    %v158 = vmul.f32 %v154, 0.01
    %v159 = vmul.f32 %v157, 10000.0
    %v160 = vmul.f32 %v158, 10000.0
    %v161 = vsub.f32 %v150, %v157
    %v162 = vadd.f32 %v154, %v157
    %v163 = vmul.f32 %v154, 0.2
    %v164 = vsub.f32 %v162, %v163
    %v165 = vsub.f32 %v164, %v158
    %v166 = vmul.f32 %v37, %v161
    %v167 = vmul.f32 %v166, %v165
    %v168 = vmin.f32 %v167, %v161
    %v169 = vmul.f32 %v165, 0.01
    %v170 = vmul.f32 %v168, 10000.0
    %v171 = vmul.f32 %v169, 10000.0
    %v172 = vsub.f32 %v161, %v168
    %v173 = vadd.f32 %v165, %v168
    %v174 = vmul.f32 %v165, 0.2
    %v175 = vsub.f32 %v173, %v174
    %v176 = vsub.f32 %v175, %v169
    %v177 = vmul.f32 %v37, %v172
    %v178 = vmul.f32 %v177, %v176
    %v179 = vmin.f32 %v178, %v172
    %v180 = vmul.f32 %v176, 0.01
    %v181 = vmul.f32 %v179, 10000.0
    %v182 = vmul.f32 %v180, 10000.0
    %v183 = vsub.f32 %v172, %v179
    %v184 = vadd.f32 %v176, %v179
    %v185 = vmul.f32 %v176, 0.2
    %v186 = vsub.f32 %v184, %v185
    %v187 = vsub.f32 %v186, %v180
    %v188 = vmul.f32 %v37, %v183
    %v189 = vmul.f32 %v188, %v187
    %v190 = vmin.f32 %v189, %v183
    %v191 = vmul.f32 %v187, 0.01
    %v192 = vmul.f32 %v190, 10000.0
    %v193 = vmul.f32 %v191, 10000.0
    %v194 = vsub.f32 %v183, %v190
    %v195 = vadd.f32 %v187, %v190
    %v196 = vmul.f32 %v187, 0.2
    %v197 = vsub.f32 %v195, %v196
    %v198 = vsub.f32 %v197, %v191
    %v199 = vmul.f32 %v37, %v194
    %v200 = vmul.f32 %v199, %v198
    %v201 = vmin.f32 %v200, %v194
    %v202 = vmul.f32 %v198, 0.01
    %v203 = vmul.f32 %v201, 10000.0
    %v204 = vmul.f32 %v202, 10000.0
    %v205 = vsub.f32 %v194, %v201
    %v206 = vadd.f32 %v198, %v201
    %v207 = vmul.f32 %v198, 0.2
    %v208 = vsub.f32 %v206, %v207
    %v209 = vsub.f32 %v208, %v202
    %v210 = vmul.f32 %v37, %v205
    %v211 = vmul.f32 %v210, %v209
    %v212 = vmin.f32 %v211, %v205
    %v213 = vmul.f32 %v209, 0.01
    %v214 = vmul.f32 %v212, 10000.0
    %v215 = vmul.f32 %v213, 10000.0
    %v217 = vrot.slane %v60, 7
    %v220 = vrot.slane %v71, 6
    %v223 = vrot.slane %v82, 5
    %v226 = vrot.slane %v93, 4
    %v229 = vrot.slane %v104, 3
    %v232 = vrot.slane %v115, 2
    %v235 = vrot.slane %v126, 1
    %v238 = vrot.slane %v148, 7
    %v241 = vrot.slane %v159, 6
    %v244 = vrot.slane %v170, 5
    %v247 = vrot.slane %v181, 4
    %v250 = vrot.slane %v192, 3
    %v253 = vrot.slane %v203, 2
    %v256 = vrot.slane %v214, 1
    %vm258 = vcmask 1040384
    %v259 = vsel %vm258, %v49, %v217
    %vm260 = vcmask 1041408
    %v261 = vsel %vm260, %v259, %v220
    %vm262 = vcmask 1042432
    %v263 = vsel %vm262, %v261, %v223
    %vm264 = vcmask 1043456
    %v265 = vsel %vm264, %v263, %v226
    %vm266 = vcmask 1044480
    %v267 = vsel %vm266, %v265, %v229
    %vm268 = vcmask 1045504
    %v269 = vsel %vm268, %v267, %v232
    %vm270 = vcmask 1046528
    %v271 = vsel %vm270, %v269, %v235
    %v272 = vsel %vm258, %v137, %v238
    %v273 = vsel %vm260, %v272, %v241
    %v274 = vsel %vm262, %v273, %v244
    %v275 = vsel %vm264, %v274, %v247
    %v276 = vsel %vm266, %v275, %v250
    %v277 = vsel %vm268, %v276, %v253
    %v278 = vsel %vm270, %v277, %v256
    %v280 = vrot.slane %v61, 7
    %v283 = vrot.slane %v72, 6
    %v286 = vrot.slane %v83, 5
    %v289 = vrot.slane %v94, 4
    %v292 = vrot.slane %v105, 3
    %v295 = vrot.slane %v116, 2
    %v298 = vrot.slane %v127, 1
    %v301 = vrot.slane %v149, 7
    %v304 = vrot.slane %v160, 6
    %v307 = vrot.slane %v171, 5
    %v310 = vrot.slane %v182, 4
    %v313 = vrot.slane %v193, 3
    %v316 = vrot.slane %v204, 2
    %v319 = vrot.slane %v215, 1
    %v321 = vsel %vm258, %v50, %v280
    %v322 = vsel %vm260, %v321, %v283
    %v323 = vsel %vm262, %v322, %v286
    %v324 = vsel %vm264, %v323, %v289
    %v325 = vsel %vm266, %v324, %v292
    %v326 = vsel %vm268, %v325, %v295
    %v327 = vsel %vm270, %v326, %v298
    %v328 = vsel %vm258, %v138, %v301
    %v329 = vsel %vm260, %v328, %v304
    %v330 = vsel %vm262, %v329, %v307
    %v331 = vsel %vm264, %v330, %v310
    %v332 = vsel %vm266, %v331, %v313
    %v333 = vsel %vm268, %v332, %v316
    %v334 = vsel %vm270, %v333, %v319
    %335 = vst [vmem:[#allocation5] sm:$0xff] %v271
    %336 = vst [vmem:[#allocation5 + $0x8] sm:$0xff] %v278
    %s337 = scalar_lea.vmem [#allocation5], 16
    %338 = vst [vmem:[%s337] sm:$0xff] %v327
    %339 = vst [vmem:[%s337 + $0x8] sm:$0xff] %v334
    %v340 = vmul.f32 %v271, 0.25
    %v341 = vmul.f32 %v278, 0.25
    %s342 = scalar_lea.vmem [#allocation5], 32
    %343 = vst [vmem:[%s342] sm:$0xff] %v340
    %344 = vst [vmem:[%s342 + $0x8] sm:$0xff] %v341
    %s345 = scalar_lea.vmem [#allocation5], 48
    %346 = vst [vmem:[%s345] sm:$0xff] %v340
    %347 = vst [vmem:[%s345 + $0x8] sm:$0xff] %v341
    %v348 = vmul.f32 %v271, 0.3
    %v349 = vmul.f32 %v278, 0.3
    %s350 = scalar_lea.vmem [#allocation5], 64
    %351 = vst [vmem:[%s350] sm:$0xff] %v348
    %352 = vst [vmem:[%s350 + $0x8] sm:$0xff] %v349
    %v353 = vmul.f32 %v271, 0.2
    %v354 = vmul.f32 %v278, 0.2
    %s355 = scalar_lea.vmem [#allocation5], 80
    %356 = vst [vmem:[%s355] sm:$0xff] %v353
    %357 = vst [vmem:[%s355 + $0x8] sm:$0xff] %v354
    // Predicated region
    $region10: #{tpu_custom_call.1} parent=1 // pred_check
      _
    $region11: #{tpu_custom_call.1} parent=1 // pred_check_branch
      %359 = sbr.rel (0) target = $region13
    $region12: #{tpu_custom_call.1} parent=1 // pred_region
      %s361 = ssub.s32 1536, 1536
      %362 = vsyncadd [#allocation4], %s361
      %s363 = sshll.u32 [#allocation5], 4
      %s364 = int_to_ptr.vmem [resolvable:$true] %s363
      %369 = dma.vmem_to_hbm [thread:$0]  %s364, 1536, %s1, [#allocation4], 128, 128, 8
    $region13: #{tpu_custom_call.1} parent=1 // pred_fallthru
      _
    // Predicated region
    $region14: #{tpu_custom_call.1} parent=1 // pred_check
      _
    $region15: #{tpu_custom_call.1} parent=1 // pred_check_branch
      %371 = sbr.rel (0) target = $region17
    $region16: #{tpu_custom_call.1} parent=1 // pred_region
      %372 = dma.done [#allocation4], 1536
    $region17: #{tpu_custom_call.1} parent=1 // pred_fallthru
      _
    %373 = vsyncpa [#allocation3], 1
    %374 = vsyncpa [#allocation4], 1

</llo_original>
